<compile_context>
chip_gen: v7x
topology: tpu7x:2x2x1
jax: 0.10.0
libtpu: 0.0.40
codegen_flags: <defaults>
</compile_context>

<pallas_src>
import math

import jax
import jax.numpy as jnp
from jax import lax
from jax.experimental import pallas as pl
from jax.experimental.pallas import tpu as pltpu

_INV_SQRT2 = 1.0 / math.sqrt(2.0)
_MIB = 1024 * 1024


def _round_up(x, m):
    return (x + m - 1) // m * m


def _cdiv(a, b):
    return (a + b - 1) // b


# ---------------------------------------------------------------------------
# Hardware introspection (generation-aware tiling).
# ---------------------------------------------------------------------------
def _tpu_generation():
    try:
        kind = jax.devices()[0].device_kind.lower()
    except Exception:
        return 6
    for g in (7, 6, 5, 4):
        if "v%d" % g in kind:
            return g
    return 6


def _vmem_capacity_bytes(gen):
    try:
        info = pltpu.get_tpu_info()
        for attr in ("vmem_capacity_bytes", "vmem_size_bytes", "vmem_bytes"):
            v = getattr(info, attr, None)
            if v:
                return int(v)
    except Exception:
        pass
    return 64 * _MIB if gen >= 7 else 128 * _MIB


def _pick_th(hidden_p, target, lane):
    """Largest multiple of `lane` that divides hidden_p and is <= target."""
    target = max(lane, target)
    best = lane                       # lane always divides hidden_p
    t = lane
    while t <= hidden_p:
        if hidden_p % t == 0 and t <= target:
            best = t
        t += lane
    return best


# ---------------------------------------------------------------------------
# Kernels.
# ---------------------------------------------------------------------------
def _ffn_chunk(x_ref, w1_ref, b1_ref, w2_ref):
    # (tm, dim) @ (dim, th) -> (tm, th), f32 accumulation on the MXU.
    h = jnp.dot(x_ref[...], w1_ref[...], preferred_element_type=jnp.float32)
    h = h + b1_ref[...].astype(jnp.float32)
    # Exact (erf-based) GELU in f32, matching torch.nn.GELU() default.
    h = 0.5 * h * (1.0 + lax.erf(h * _INV_SQRT2))
    # Dropout(p=0.0) == identity.
    return jnp.dot(h.astype(w2_ref.dtype), w2_ref[...],
                   preferred_element_type=jnp.float32)


def _ffn_kernel_scratch(x_ref, w1_ref, b1_ref, w2_ref, b2_ref, o_ref, acc_ref):
    """Non-f32 output: accumulate in an f32 VMEM scratch, cast at the end."""
    k = pl.program_id(1)

    @pl.when(k == 0)
    def _init():
        acc_ref[...] = jnp.broadcast_to(
            b2_ref[...].astype(jnp.float32), acc_ref.shape)

    acc_ref[...] += _ffn_chunk(x_ref, w1_ref, b1_ref, w2_ref)

    @pl.when(k == pl.num_programs(1) - 1)
    def _store():
        o_ref[...] = acc_ref[...].astype(o_ref.dtype)


def _ffn_kernel_inplace(x_ref, w1_ref, b1_ref, w2_ref, b2_ref, o_ref):
    """f32 output: accumulate directly into the resident output block."""
    k = pl.program_id(1)

    @pl.when(k == 0)
    def _init():
        o_ref[...] = jnp.broadcast_to(
            b2_ref[...].astype(o_ref.dtype), o_ref.shape)

    o_ref[...] += _ffn_chunk(x_ref, w1_ref, b1_ref, w2_ref)


# ---------------------------------------------------------------------------
# Wrapper.
# ---------------------------------------------------------------------------
def feed_forward(x, w1, b1, w2, b2, *, tm=None, th=None):
    """x: (..., dim). w1: (dim, hidden), b1: (hidden,), w2: (hidden, dim), b2: (dim,).

    Weights are (in_features, out_features) = transpose of PyTorch's Linear
    weight.  Computes Linear -> GELU(exact) -> Dropout(0) -> Linear ->
    Dropout(0) with f32 MXU accumulation.
    """
    orig_shape = x.shape
    dim = orig_shape[-1]
    hidden = w1.shape[1]
    x2 = x.reshape(-1, dim)
    M = x2.shape[0]

    out_dtype = x.dtype
    itemsize = jnp.dtype(x.dtype).itemsize
    w_itemsize = jnp.dtype(w1.dtype).itemsize
    out_itemsize = jnp.dtype(out_dtype).itemsize
    sub = {4: 8, 2: 16, 1: 32}.get(itemsize, 8)

    gen = _tpu_generation()
    cores = 2 if gen >= 7 else 1
    lane_align = 256 if gen >= 6 else 128   # MXU 256x256 on v6e/v7x, 128x128 on v5e
    vmem_cap = _vmem_capacity_bytes(gen)
    # Leave headroom for Mosaic internal scratch / DMA descriptors.
    budget = vmem_cap - (12 * _MIB if vmem_cap <= 64 * _MIB else 24 * _MIB)

    # MXU-aligned feature dims.
    dim_p = _round_up(dim, lane_align)
    hidden_p = _round_up(hidden, lane_align)

    # Hidden tile: divisor of hidden_p (no extra weight padding); bigger when
    # dim is small so per-step MXU work amortizes the fixed step overhead.
    if th is None:
        th_target = 2048 if dim_p <= 1024 else 512
    else:
        th_target = _round_up(th, lane_align)
    th = _pick_th(hidden_p, th_target, lane_align)

    # Row tile: sized from the weight-streaming roofline (AI ~ 2*tm/itemsize).
    if tm is None:
        if gen >= 7:
            tm_target = 512
        elif gen == 6:
            tm_target = 1024 if itemsize <= 2 else 512
        else:
            tm_target = 512
    else:
        tm_target = tm
    tm = max(sub, min(_round_up(tm_target, sub), _round_up(M, sub)))

    # On multi-TensorCore chips (v7x) ensure the "parallel" row axis has >= 2
    # tiles so both cores get work.
    if cores >= 2 and _cdiv(M, tm) < 2:
        half = max(sub, _round_up(_cdiv(M, 2), sub))
        if half < tm:
            tm = half

    use_scratch = jnp.dtype(out_dtype) != jnp.dtype(jnp.float32)

    def _footprint(tm_, th_):
        # Conservative: assume double-buffered x/out (valid even when the
        # single-buffer pipeline hint is unavailable).
        w_bytes = 2 * (dim_p * th_ + th_ + th_ * dim_p + dim_p) * w_itemsize
        x_bytes = 2 * tm_ * dim_p * itemsize
        o_bytes = 2 * tm_ * dim_p * out_itemsize
        acc_bytes = tm_ * dim_p * 4 if use_scratch else 0
        h_bytes = tm_ * th_ * 4
        return w_bytes + x_bytes + o_bytes + acc_bytes + h_bytes

    # Shrink tiles until they fit the VMEM budget (rarely triggers).
    for _ in range(64):
        if _footprint(tm, th) <= budget:
            break
        if tm > max(256, sub):
            tm = max(sub, _round_up(tm // 2, sub))
        elif th > lane_align:
            th = _pick_th(hidden_p, max(lane_align, th // 2), lane_align)
        elif tm > sub:
            tm = max(sub, _round_up(tm // 2, sub))
        else:
            break

    M_p = _round_up(M, tm)

    # Zero-pad operands.  Padded hidden columns get bias 0 -> GELU(0) = 0 and
    # meet zero rows of W2, so they contribute nothing; padded output
    # rows/columns are sliced off at the end.
    if (M_p, dim_p) != (M, dim):
        x2 = jnp.pad(x2, ((0, M_p - M), (0, dim_p - dim)))
    w1_p = w1
    if (dim_p, hidden_p) != (dim, hidden):
        w1_p = jnp.pad(w1, ((0, dim_p - dim), (0, hidden_p - hidden)))
    b1_p = b1.reshape(1, hidden)
    if hidden_p != hidden:
        b1_p = jnp.pad(b1_p, ((0, 0), (0, hidden_p - hidden)))
    w2_p = w2
    if (hidden_p, dim_p) != (hidden, dim):
        w2_p = jnp.pad(w2, ((0, hidden_p - hidden), (0, dim_p - dim)))
    b2_p = b2.reshape(1, dim)
    if dim_p != dim:
        b2_p = jnp.pad(b2_p, ((0, 0), (0, dim_p - dim)))

    grid = (M_p // tm, hidden_p // th)
    n_row_tiles = grid[0]

    # Always set the scoped VMEM limit (v5e's default is only 16 MiB), with
    # headroom below physical capacity.
    vmem_limit = int(min(budget, max(_footprint(tm, th) * 5 // 4, 32 * _MIB)))

    # True HBM traffic: weights are re-streamed once per row tile.
    cost = pl.CostEstimate(
        flops=4 * M_p * dim_p * hidden_p,
        transcendentals=M_p * hidden_p,
        bytes_accessed=int(
            M_p * dim_p * itemsize                       # x read
            + M_p * dim_p * out_itemsize                 # out write
            + n_row_tiles * w_itemsize
            * (2 * dim_p * hidden_p + hidden_p + dim_p)),
    )

    kernel = _ffn_kernel_scratch if use_scratch else _ffn_kernel_inplace
    scratch = [pltpu.VMEM((tm, dim_p), jnp.float32)] if use_scratch else []

    def _run(single_buffer):
        if single_buffer:
            # x/out block indices are k-invariant; double-buffering them
            # across the inner hidden axis buys nothing -> single-buffer to
            # reclaim VMEM.
            x_spec = pl.BlockSpec((tm, dim_p), lambda i, k: (i, 0),
                                  pipeline_mode=pl.Buffered(1))
            o_spec = pl.BlockSpec((tm, dim_p), lambda i, k: (i, 0),
                                  pipeline_mode=pl.Buffered(1))
        else:
            x_spec = pl.BlockSpec((tm, dim_p), lambda i, k: (i, 0))
            o_spec = pl.BlockSpec((tm, dim_p), lambda i, k: (i, 0))

        return pl.pallas_call(
            kernel,
            out_shape=jax.ShapeDtypeStruct((M_p, dim_p), out_dtype),
            grid_spec=pltpu.PrefetchScalarGridSpec(
                num_scalar_prefetch=0,
                grid=grid,
                in_specs=[
                    x_spec,                                            # x rows
                    pl.BlockSpec((dim_p, th), lambda i, k: (0, k)),    # W1 chunk
                    pl.BlockSpec((1, th), lambda i, k: (0, k)),        # b1 chunk
                    pl.BlockSpec((th, dim_p), lambda i, k: (k, 0)),    # W2 chunk
                    pl.BlockSpec((1, dim_p), lambda i, k: (0, 0)),     # b2
                ],
                out_specs=o_spec,
                scratch_shapes=scratch,
            ),
            compiler_params=pltpu.CompilerParams(
                dimension_semantics=("parallel", "arbitrary"),
                vmem_limit_bytes=vmem_limit,
            ),
            cost_estimate=cost,
        )(x2, w1_p, b1_p, w2_p, b2_p)

    try:
        out = _run(single_buffer=True)
    except Exception:
        # pipeline_mode=pl.Buffered(1) hint unavailable on this jax/Mosaic
        # version — fall back to default double-buffering.
        out = _run(single_buffer=False)

    return out[:M, :dim].reshape(orig_shape)


def _reference(x, w1, b1, w2, b2):
    h = x @ w1 + b1
    h = 0.5 * h * (1.0 + lax.erf(h * _INV_SQRT2))
    return h @ w2 + b2


if __name__ == "__main__":
    # Small shapes consistent with the module: tokens of size `dim`.
    batch, seq, dim, hidden_dim = 2, 8, 32, 64

    key = jax.random.PRNGKey(0)
    kx, kw1, kb1, kw2, kb2 = jax.random.split(key, 5)

    x = jax.random.normal(kx, (batch, seq, dim), dtype=jnp.float32)

    # Deterministic parameter init (PyTorch-Linear-like uniform bounds).
    bound1 = 1.0 / math.sqrt(dim)
    w1 = jax.random.uniform(kw1, (dim, hidden_dim), jnp.float32, -bound1, bound1)
    b1 = jax.random.uniform(kb1, (hidden_dim,), jnp.float32, -bound1, bound1)
    bound2 = 1.0 / math.sqrt(hidden_dim)
    w2 = jax.random.uniform(kw2, (hidden_dim, dim), jnp.float32, -bound2, bound2)
    b2 = jax.random.uniform(kb2, (dim,), jnp.float32, -bound2, bound2)

    out = feed_forward(x, w1, b1, w2, b2)
    out = jax.block_until_ready(out)

    ref = _reference(x, w1, b1, w2, b2)
    assert out.shape == x.shape
    assert jnp.allclose(out, ref, atol=1e-4, rtol=1e-4), "mismatch vs reference"

    print("KERNEL_OK")
</pallas_src>

<mosaic_0001>
module attributes {stable_mosaic.version = 11 : i64} {
  func.func @_ffn_kernel_inplace(%arg0: i32, %arg1: i32, %arg2: memref<16x256xf32, #tpu.memory_space<vmem>>, %arg3: memref<256x256xf32, #tpu.memory_space<vmem>>, %arg4: memref<1x256xf32, #tpu.memory_space<vmem>>, %arg5: memref<256x256xf32, #tpu.memory_space<vmem>>, %arg6: memref<1x256xf32, #tpu.memory_space<vmem>>, %arg7: memref<16x256xf32, #tpu.memory_space<vmem>>) attributes {dimension_semantics = [#tpu.dimension_semantics<parallel>, #tpu.dimension_semantics<arbitrary>], iteration_bounds = array<i64: 1, 1>, scalar_prefetch = 0 : i64, scratch_operands = 0 : i64, tpu.core_type = #tpu.core_type<tc>, window_params = [{pipeline_mode = #tpu.pipeline_mode<synchronous>, transform_indices = @transform_0, window_bounds = array<i64: 16, 256>}, {transform_indices = @transform_1, window_bounds = array<i64: 256, 256>}, {transform_indices = @transform_2, window_bounds = array<i64: 1, 256>}, {transform_indices = @transform_3, window_bounds = array<i64: 256, 256>}, {pipeline_mode = #tpu.pipeline_mode<synchronous>, transform_indices = @transform_4, window_bounds = array<i64: 1, 256>}, {pipeline_mode = #tpu.pipeline_mode<synchronous>, transform_indices = @transform_5, window_bounds = array<i64: 16, 256>}]} {
    %c0_i32 = arith.constant 0 : i32
    %0 = arith.cmpi eq, %arg1, %c0_i32 : i32
    %1 = arith.extui %0 : i1 to i32
    %c0_i32_0 = arith.constant 0 : i32
    %2 = arith.cmpi ne, %1, %c0_i32_0 : i32
    scf.if %2 {
      %c0_16 = arith.constant 0 : index
      %c0_17 = arith.constant 0 : index
      %22 = vector.load %arg6[%c0_16, %c0_17] : memref<1x256xf32, #tpu.memory_space<vmem>>, vector<1x256xf32>
      %23 = vector.shape_cast %22 : vector<1x256xf32> to vector<1x256xf32>
      %24 = vector.broadcast %23 : vector<1x256xf32> to vector<16x256xf32>
      %c0_18 = arith.constant 0 : index
      %c0_19 = arith.constant 0 : index
      %25 = vector.load %arg7[%c0_18, %c0_19] : memref<16x256xf32, #tpu.memory_space<vmem>>, vector<16x256xf32>
      tpu.vector_store %arg7[%c0_18, %c0_19], %24 {strides = array<i32>} : memref<16x256xf32, #tpu.memory_space<vmem>>, vector<16x256xf32>,
    } else {
    }
    %c0 = arith.constant 0 : index
    %c0_1 = arith.constant 0 : index
    %3 = vector.load %arg7[%c0, %c0_1] : memref<16x256xf32, #tpu.memory_space<vmem>>, vector<16x256xf32>
    %c0_2 = arith.constant 0 : index
    %c0_3 = arith.constant 0 : index
    %4 = vector.load %arg2[%c0_2, %c0_3] : memref<16x256xf32, #tpu.memory_space<vmem>>, vector<16x256xf32>
    %c0_4 = arith.constant 0 : index
    %c0_5 = arith.constant 0 : index
    %5 = vector.load %arg3[%c0_4, %c0_5] : memref<256x256xf32, #tpu.memory_space<vmem>>, vector<256x256xf32>
    %cst = arith.constant dense<0.000000e+00> : vector<16x256xf32>
    %6 = tpu.matmul %4, %5, %cst {dimension_numbers = #tpu.dot_dimension_numbers<[1], [0], [0], [1], [0, 0, 1, 1], [], []>} : vector<16x256xf32>, vector<256x256xf32>, vector<16x256xf32> -> vector<16x256xf32>
    %c0_6 = arith.constant 0 : index
    %c0_7 = arith.constant 0 : index
    %7 = vector.load %arg4[%c0_6, %c0_7] : memref<1x256xf32, #tpu.memory_space<vmem>>, vector<1x256xf32>
    %8 = vector.broadcast %7 : vector<1x256xf32> to vector<16x256xf32>
    %9 = arith.addf %6, %8 : vector<16x256xf32>
    %cst_8 = arith.constant 5.000000e-01 : f32
    %10 = vector.broadcast %cst_8 : f32 to vector<16x256xf32>
    %11 = arith.mulf %10, %9 : vector<16x256xf32>
    %cst_9 = arith.constant 0.707106769 : f32
    %12 = vector.broadcast %cst_9 : f32 to vector<16x256xf32>
    %13 = arith.mulf %9, %12 : vector<16x256xf32>
    %14 = math.erf %13 : vector<16x256xf32>
    %cst_10 = arith.constant 1.000000e+00 : f32
    %15 = vector.broadcast %cst_10 : f32 to vector<16x256xf32>
    %16 = arith.addf %15, %14 : vector<16x256xf32>
    %17 = arith.mulf %11, %16 : vector<16x256xf32>
    %c0_11 = arith.constant 0 : index
    %c0_12 = arith.constant 0 : index
    %18 = vector.load %arg5[%c0_11, %c0_12] : memref<256x256xf32, #tpu.memory_space<vmem>>, vector<256x256xf32>
    %cst_13 = arith.constant dense<0.000000e+00> : vector<16x256xf32>
    %19 = tpu.matmul %17, %18, %cst_13 {dimension_numbers = #tpu.dot_dimension_numbers<[1], [0], [0], [1], [0, 0, 1, 1], [], []>} : vector<16x256xf32>, vector<256x256xf32>, vector<16x256xf32> -> vector<16x256xf32>
    %20 = arith.addf %3, %19 : vector<16x256xf32>
    %c0_14 = arith.constant 0 : index
    %c0_15 = arith.constant 0 : index
    %21 = vector.load %arg7[%c0_14, %c0_15] : memref<16x256xf32, #tpu.memory_space<vmem>>, vector<16x256xf32>
    tpu.vector_store %arg7[%c0_14, %c0_15], %20 {strides = array<i32>} : memref<16x256xf32, #tpu.memory_space<vmem>>, vector<16x256xf32>,
    return
  }
  func.func @transform_0(%arg0: i32, %arg1: i32) -> (i32, i32) {
    %c0_i32 = arith.constant 0 : i32
    %c0_i32_0 = arith.constant 0 : i32
    return %arg0, %c0_i32 : i32, i32
  }
  func.func @transform_1(%arg0: i32, %arg1: i32) -> (i32, i32) {
    %c0_i32 = arith.constant 0 : i32
    %c0_i32_0 = arith.constant 0 : i32
    return %c0_i32, %arg1 : i32, i32
  }
  func.func @transform_2(%arg0: i32, %arg1: i32) -> (i32, i32) {
    %c0_i32 = arith.constant 0 : i32
    %c0_i32_0 = arith.constant 0 : i32
    return %c0_i32, %arg1 : i32, i32
  }
  func.func @transform_3(%arg0: i32, %arg1: i32) -> (i32, i32) {
    %c0_i32 = arith.constant 0 : i32
    %c0_i32_0 = arith.constant 0 : i32
    return %arg1, %c0_i32 : i32, i32
  }
  func.func @transform_4(%arg0: i32, %arg1: i32) -> (i32, i32) {
    %c0_i32 = arith.constant 0 : i32
    %c0_i32_0 = arith.constant 0 : i32
    %c0_i32_1 = arith.constant 0 : i32
    return %c0_i32, %c0_i32_0 : i32, i32
  }
  func.func @transform_5(%arg0: i32, %arg1: i32) -> (i32, i32) {
    %c0_i32 = arith.constant 0 : i32
    %c0_i32_0 = arith.constant 0 : i32
    return %arg0, %c0_i32 : i32, i32
  }
}

module attributes {stable_mosaic.version = 11 : i64} {
  func.func @_ffn_kernel_inplace(%arg0: i32, %arg1: i32, %arg2: memref<16x256xf32, #tpu.memory_space<vmem>>, %arg3: memref<256x256xf32, #tpu.memory_space<vmem>>, %arg4: memref<1x256xf32, #tpu.memory_space<vmem>>, %arg5: memref<256x256xf32, #tpu.memory_space<vmem>>, %arg6: memref<1x256xf32, #tpu.memory_space<vmem>>, %arg7: memref<16x256xf32, #tpu.memory_space<vmem>>) attributes {dimension_semantics = [#tpu.dimension_semantics<parallel>, #tpu.dimension_semantics<arbitrary>], iteration_bounds = array<i64: 1, 1>, scalar_prefetch = 0 : i64, scratch_operands = 0 : i64, tpu.core_type = #tpu.core_type<tc>, window_params = [{transform_indices = @transform_0, window_bounds = array<i64: 16, 256>}, {transform_indices = @transform_1, window_bounds = array<i64: 256, 256>}, {transform_indices = @transform_2, window_bounds = array<i64: 1, 256>}, {transform_indices = @transform_3, window_bounds = array<i64: 256, 256>}, {pipeline_mode = #tpu.pipeline_mode<synchronous>, transform_indices = @transform_4, window_bounds = array<i64: 1, 256>}, {transform_indices = @transform_5, window_bounds = array<i64: 16, 256>}]} {
    %c0_i32 = arith.constant 0 : i32
    %0 = arith.cmpi eq, %arg1, %c0_i32 : i32
    %1 = arith.extui %0 : i1 to i32
    %c0_i32_0 = arith.constant 0 : i32
    %2 = arith.cmpi ne, %1, %c0_i32_0 : i32
    scf.if %2 {
      %c0_16 = arith.constant 0 : index
      %c0_17 = arith.constant 0 : index
      %22 = vector.load %arg6[%c0_16, %c0_17] : memref<1x256xf32, #tpu.memory_space<vmem>>, vector<1x256xf32>
      %23 = vector.shape_cast %22 : vector<1x256xf32> to vector<1x256xf32>
      %24 = vector.broadcast %23 : vector<1x256xf32> to vector<16x256xf32>
      %c0_18 = arith.constant 0 : index
      %c0_19 = arith.constant 0 : index
      %25 = vector.load %arg7[%c0_18, %c0_19] : memref<16x256xf32, #tpu.memory_space<vmem>>, vector<16x256xf32>
      tpu.vector_store %arg7[%c0_18, %c0_19], %24 {strides = array<i32>} : memref<16x256xf32, #tpu.memory_space<vmem>>, vector<16x256xf32>,
    } else {
    }
    %c0 = arith.constant 0 : index
    %c0_1 = arith.constant 0 : index
    %3 = vector.load %arg7[%c0, %c0_1] : memref<16x256xf32, #tpu.memory_space<vmem>>, vector<16x256xf32>
    %c0_2 = arith.constant 0 : index
    %c0_3 = arith.constant 0 : index
    %4 = vector.load %arg2[%c0_2, %c0_3] : memref<16x256xf32, #tpu.memory_space<vmem>>, vector<16x256xf32>
    %c0_4 = arith.constant 0 : index
    %c0_5 = arith.constant 0 : index
    %5 = vector.load %arg3[%c0_4, %c0_5] : memref<256x256xf32, #tpu.memory_space<vmem>>, vector<256x256xf32>
    %cst = arith.constant dense<0.000000e+00> : vector<16x256xf32>
    %6 = tpu.matmul %4, %5, %cst {dimension_numbers = #tpu.dot_dimension_numbers<[1], [0], [0], [1], [0, 0, 1, 1], [], []>} : vector<16x256xf32>, vector<256x256xf32>, vector<16x256xf32> -> vector<16x256xf32>
    %c0_6 = arith.constant 0 : index
    %c0_7 = arith.constant 0 : index
    %7 = vector.load %arg4[%c0_6, %c0_7] : memref<1x256xf32, #tpu.memory_space<vmem>>, vector<1x256xf32>
    %8 = vector.broadcast %7 : vector<1x256xf32> to vector<16x256xf32>
    %9 = arith.addf %6, %8 : vector<16x256xf32>
    %cst_8 = arith.constant 5.000000e-01 : f32
    %10 = vector.broadcast %cst_8 : f32 to vector<16x256xf32>
    %11 = arith.mulf %10, %9 : vector<16x256xf32>
    %cst_9 = arith.constant 0.707106769 : f32
    %12 = vector.broadcast %cst_9 : f32 to vector<16x256xf32>
    %13 = arith.mulf %9, %12 : vector<16x256xf32>
    %14 = math.erf %13 : vector<16x256xf32>
    %cst_10 = arith.constant 1.000000e+00 : f32
    %15 = vector.broadcast %cst_10 : f32 to vector<16x256xf32>
    %16 = arith.addf %15, %14 : vector<16x256xf32>
    %17 = arith.mulf %11, %16 : vector<16x256xf32>
    %c0_11 = arith.constant 0 : index
    %c0_12 = arith.constant 0 : index
    %18 = vector.load %arg5[%c0_11, %c0_12] : memref<256x256xf32, #tpu.memory_space<vmem>>, vector<256x256xf32>
    %cst_13 = arith.constant dense<0.000000e+00> : vector<16x256xf32>
    %19 = tpu.matmul %17, %18, %cst_13 {dimension_numbers = #tpu.dot_dimension_numbers<[1], [0], [0], [1], [0, 0, 1, 1], [], []>} : vector<16x256xf32>, vector<256x256xf32>, vector<16x256xf32> -> vector<16x256xf32>
    %20 = arith.addf %3, %19 : vector<16x256xf32>
    %c0_14 = arith.constant 0 : index
    %c0_15 = arith.constant 0 : index
    %21 = vector.load %arg7[%c0_14, %c0_15] : memref<16x256xf32, #tpu.memory_space<vmem>>, vector<16x256xf32>
    tpu.vector_store %arg7[%c0_14, %c0_15], %20 {strides = array<i32>} : memref<16x256xf32, #tpu.memory_space<vmem>>, vector<16x256xf32>,
    return
  }
  func.func @transform_0(%arg0: i32, %arg1: i32) -> (i32, i32) {
    %c0_i32 = arith.constant 0 : i32
    %c0_i32_0 = arith.constant 0 : i32
    return %arg0, %c0_i32 : i32, i32
  }
  func.func @transform_1(%arg0: i32, %arg1: i32) -> (i32, i32) {
    %c0_i32 = arith.constant 0 : i32
    %c0_i32_0 = arith.constant 0 : i32
    return %c0_i32, %arg1 : i32, i32
  }
  func.func @transform_2(%arg0: i32, %arg1: i32) -> (i32, i32) {
    %c0_i32 = arith.constant 0 : i32
    %c0_i32_0 = arith.constant 0 : i32
    return %c0_i32, %arg1 : i32, i32
  }
  func.func @transform_3(%arg0: i32, %arg1: i32) -> (i32, i32) {
    %c0_i32 = arith.constant 0 : i32
    %c0_i32_0 = arith.constant 0 : i32
    return %arg1, %c0_i32 : i32, i32
  }
  func.func @transform_4(%arg0: i32, %arg1: i32) -> (i32, i32) {
    %c0_i32 = arith.constant 0 : i32
    %c0_i32_0 = arith.constant 0 : i32
    %c0_i32_1 = arith.constant 0 : i32
    return %c0_i32, %c0_i32_0 : i32, i32
  }
  func.func @transform_5(%arg0: i32, %arg1: i32) -> (i32, i32) {
    %c0_i32 = arith.constant 0 : i32
    %c0_i32_0 = arith.constant 0 : i32
    return %arg0, %c0_i32 : i32, i32
  }
}

</mosaic_0001>

<llo_original>
// kernel: tpu_custom_call.1
$region0: #{tpu_custom_call.1}
  #allocation0 [shape = 'u32[]', space=smem, size = 0x4, offset = 0x4, fixed_abs, tag = 'smem constant byte address 0x4 - core index']
  #allocation1 [shape = 'u32[144,128]{1,0:T(1,128)}', space=vmem, size = 0x12000, scoped, tag = 'internal scratch']
  %s0 = inlined_call_operand.hbm [shape: f32[16,256], index: 0, kind: input, shape index: {}]
  %s1 = inlined_call_operand.hbm [shape: f32[256,256], index: 1, kind: input, shape index: {}]
  %s2 = inlined_call_operand.vmem [shape: f32[1,256], index: 2, kind: input, shape index: {}]
  %s3 = inlined_call_operand.hbm [shape: f32[256,256], index: 3, kind: input, shape index: {}]
  %s4 = inlined_call_operand.vmem [shape: f32[1,256], index: 4, kind: input, shape index: {}]
  %s5 = inlined_call_operand.hbm [shape: f32[16,256], index: 5, kind: output, shape index: {}]
  %s6 = sld [smem:[#allocation0]]
  $region46: #{tpu_custom_call.1} parent=0
    _
  %s8 = ssub.s32 1, %s6
  %s9 = scalar_select 0, %s8, %s6
  $region1: #{tpu_custom_call.1} parent=0
    #allocation2 [shape = 'u8[16384]{0}', space=vmem, size = 0x4000, scoped, tag = 'input window, operand 0, single buffered']
    #allocation3 [shape = 's32[1]{0}', space=sflag, size = 0x4, scoped, tag = 'scoped memory for tpu_custom_call.1']
    #allocation4 [shape = 's32[1]{0}', space=sflag, size = 0x4, scoped, tag = 'scoped memory for tpu_custom_call.1']
    #allocation5 [shape = 'u8[262144]{0}', space=vmem, size = 0x40000, scoped, tag = 'input window, operand 1, single buffered']
    #allocation6 [shape = 's32[1]{0}', space=sflag, size = 0x4, scoped, tag = 'scoped memory for tpu_custom_call.1']
    #allocation7 [shape = 'u8[262144]{0}', space=vmem, size = 0x40000, scoped, tag = 'input window, operand 3, single buffered']
    #allocation8 [shape = 'u8[16384]{0}', space=vmem, size = 0x4000, scoped, tag = 'output window, operand 0, single buffered']
    %10 = vsyncpa [#allocation3], 0
    %11 = vsyncpa [#allocation6], 0
    %12 = vsyncpa [#allocation4], 0
    // Predicated region
    $region2: #{tpu_custom_call.1} parent=1 // pred_check
      _
    $region3: #{tpu_custom_call.1} parent=1 // pred_check_branch
      %14 = sbr.rel (0) target = $region5
    $region4: #{tpu_custom_call.1} parent=1 // pred_region
      %s16 = ssub.s32 512, 512
      %17 = vsyncadd [#allocation3], %s16
      %s18 = sshll.u32 [#allocation2], 4
      %s19 = int_to_ptr.vmem [resolvable:$true] %s18
      %24 = dma.hbm_to_vmem [thread:$0]  %s0, 512, %s19, [#allocation3], 256, 256, 16
    $region5: #{tpu_custom_call.1} parent=1 // pred_fallthru
      _
    // Predicated region
    $region6: #{tpu_custom_call.1} parent=1 // pred_check
      _
    $region7: #{tpu_custom_call.1} parent=1 // pred_check_branch
      %26 = sbr.rel (0) target = $region9
    $region8: #{tpu_custom_call.1} parent=1 // pred_region
      %s28 = ssub.s32 8192, 8192
      %29 = vsyncadd [#allocation6], %s28
      %s30 = sshll.u32 [#allocation5], 4
      %s31 = int_to_ptr.vmem [resolvable:$true] %s30
      %36 = dma.hbm_to_vmem [thread:$0]  %s1, 8192, %s31, [#allocation6], 256, 256, 16
    $region9: #{tpu_custom_call.1} parent=1 // pred_fallthru
      _
    // Predicated region
    $region10: #{tpu_custom_call.1} parent=1 // pred_check
      _
    $region11: #{tpu_custom_call.1} parent=1 // pred_check_branch
      %38 = sbr.rel (0) target = $region13
    $region12: #{tpu_custom_call.1} parent=1 // pred_region
      _
    $region13: #{tpu_custom_call.1} parent=1 // pred_fallthru
      _
    // Predicated region
    $region14: #{tpu_custom_call.1} parent=1 // pred_check
      _
    $region15: #{tpu_custom_call.1} parent=1 // pred_check_branch
      %40 = sbr.rel (0) target = $region17
    $region16: #{tpu_custom_call.1} parent=1 // pred_region
      %s42 = ssub.s32 8192, 8192
      %43 = vsyncadd [#allocation6], %s42
      %s44 = sshll.u32 [#allocation7], 4
      %s45 = int_to_ptr.vmem [resolvable:$true] %s44
      %50 = dma.hbm_to_vmem [thread:$0]  %s3, 8192, %s45, [#allocation6], 256, 256, 16
    $region17: #{tpu_custom_call.1} parent=1 // pred_fallthru
      _
    // Predicated region
    $region18: #{tpu_custom_call.1} parent=1 // pred_check
      _
    $region19: #{tpu_custom_call.1} parent=1 // pred_check_branch
      %52 = sbr.rel (0) target = $region21
    $region20: #{tpu_custom_call.1} parent=1 // pred_region
      _
    $region21: #{tpu_custom_call.1} parent=1 // pred_fallthru
      _
    // Predicated region
    $region22: #{tpu_custom_call.1} parent=1 // pred_check
      _
    $region23: #{tpu_custom_call.1} parent=1 // pred_check_branch
      %54 = sbr.rel (0) target = $region25
    $region24: #{tpu_custom_call.1} parent=1 // pred_region
      %55 = dma.done [#allocation3], 512
    $region25: #{tpu_custom_call.1} parent=1 // pred_fallthru
      _
    // Predicated region
    $region26: #{tpu_custom_call.1} parent=1 // pred_check
      _
    $region27: #{tpu_custom_call.1} parent=1 // pred_check_branch
      %57 = sbr.rel (0) target = $region29
    $region28: #{tpu_custom_call.1} parent=1 // pred_region
      %58 = dma.done [#allocation6], 8192
    $region29: #{tpu_custom_call.1} parent=1 // pred_fallthru
      _
    // Predicated region
    $region30: #{tpu_custom_call.1} parent=1 // pred_check
      _
    $region31: #{tpu_custom_call.1} parent=1 // pred_check_branch
      %60 = sbr.rel (0) target = $region33
    $region32: #{tpu_custom_call.1} parent=1 // pred_region
      %61 = dma.done [#allocation6], 8192
    $region33: #{tpu_custom_call.1} parent=1 // pred_fallthru
      _
    %p62 = scmp.eq.s32.totalorder 0, 0
    // Predicated region
    $region34: #{tpu_custom_call.1} parent=1 // pred_check
      %p63 = pneg %p62
    $region35: #{tpu_custom_call.1} parent=1 // pred_check_branch
      %65 = sbr.rel (%p63) target = $region37
    $region36: #{tpu_custom_call.1} parent=1 // pred_region
      %v66 = vld [vmem:[%s4] sm:$0x3]
      %v68 = vlaneseq
      %v69 = vshrl.u32 %v68, 7
      %v70 = vsub.s32 0, %v69
      %v71 = vrot.slane %v66, %v70
      %v72 = vlaneseq
      %v73 = vshrl.u32 %v72, 7
      %v74 = vsub.s32 1, %v73
      %v75 = vrot.slane %v66, %v74
      %78 = vst [vmem:[#allocation8] sm:$0xff] %v71
      %79 = vst [vmem:[#allocation8 + $0x8] sm:$0xff] %v75
      %80 = vst [vmem:[#allocation8 + $0x10] sm:$0xff] %v71
      %81 = vst [vmem:[#allocation8 + $0x18] sm:$0xff] %v75
    $region37: #{tpu_custom_call.1} parent=1 // pred_fallthru
      _
    %v82 = vld [vmem:[#allocation8] sm:$0xff]
    %v83 = vld [vmem:[#allocation8 + $0x8] sm:$0xff]
    %v84 = vld [vmem:[#allocation8 + $0x10] sm:$0xff]
    %v85 = vld [vmem:[#allocation8 + $0x18] sm:$0xff]
    %v86 = vld [vmem:[#allocation2] sm:$0xff]
    %v87 = vld [vmem:[#allocation2 + $0x8] sm:$0xff]
    %v88 = vld [vmem:[#allocation2 + $0x10] sm:$0xff]
    %v89 = vld [vmem:[#allocation2 + $0x18] sm:$0xff]
    %v90 = vld [vmem:[#allocation5] sm:$0xff]
    %v91 = vld [vmem:[#allocation5 + $0x8] sm:$0xff]
    %v92 = vld [vmem:[#allocation5 + $0x10] sm:$0xff]
    %v93 = vld [vmem:[#allocation5 + $0x18] sm:$0xff]
    %v94 = vld [vmem:[#allocation5 + $0x20] sm:$0xff]
    %v95 = vld [vmem:[#allocation5 + $0x28] sm:$0xff]
    %v96 = vld [vmem:[#allocation5 + $0x30] sm:$0xff]
    %v97 = vld [vmem:[#allocation5 + $0x38] sm:$0xff]
    %v98 = vld [vmem:[#allocation5 + $0x40] sm:$0xff]
    %v99 = vld [vmem:[#allocation5 + $0x48] sm:$0xff]
    %v100 = vld [vmem:[#allocation5 + $0x50] sm:$0xff]
    %v101 = vld [vmem:[#allocation5 + $0x58] sm:$0xff]
    %v102 = vld [vmem:[#allocation5 + $0x60] sm:$0xff]
    %v103 = vld [vmem:[#allocation5 + $0x68] sm:$0xff]
    %v104 = vld [vmem:[#allocation5 + $0x70] sm:$0xff]
    %v105 = vld [vmem:[#allocation5 + $0x78] sm:$0xff]
    %v106 = vld [vmem:[#allocation5 + $0x80] sm:$0xff]
    %v107 = vld [vmem:[#allocation5 + $0x88] sm:$0xff]
    %v108 = vld [vmem:[#allocation5 + $0x90] sm:$0xff]
    %v109 = vld [vmem:[#allocation5 + $0x98] sm:$0xff]
    %v110 = vld [vmem:[#allocation5 + $0xa0] sm:$0xff]
    %v111 = vld [vmem:[#allocation5 + $0xa8] sm:$0xff]
    %v112 = vld [vmem:[#allocation5 + $0xb0] sm:$0xff]
    %v113 = vld [vmem:[#allocation5 + $0xb8] sm:$0xff]
    %v114 = vld [vmem:[#allocation5 + $0xc0] sm:$0xff]
    %v115 = vld [vmem:[#allocation5 + $0xc8] sm:$0xff]
    %v116 = vld [vmem:[#allocation5 + $0xd0] sm:$0xff]
    %v117 = vld [vmem:[#allocation5 + $0xd8] sm:$0xff]
    %v118 = vld [vmem:[#allocation5 + $0xe0] sm:$0xff]
    %v119 = vld [vmem:[#allocation5 + $0xe8] sm:$0xff]
    %v120 = vld [vmem:[#allocation5 + $0xf0] sm:$0xff]
    %v121 = vld [vmem:[#allocation5 + $0xf8] sm:$0xff]
    %v122 = vld [vmem:[#allocation5 + $0x100] sm:$0xff]
    %v123 = vld [vmem:[#allocation5 + $0x108] sm:$0xff]
    %v124 = vld [vmem:[#allocation5 + $0x110] sm:$0xff]
    %v125 = vld [vmem:[#allocation5 + $0x118] sm:$0xff]
    %v126 = vld [vmem:[#allocation5 + $0x120] sm:$0xff]
    %v127 = vld [vmem:[#allocation5 + $0x128] sm:$0xff]
    %v128 = vld [vmem:[#allocation5 + $0x130] sm:$0xff]
    %v129 = vld [vmem:[#allocation5 + $0x138] sm:$0xff]
    %v130 = vld [vmem:[#allocation5 + $0x140] sm:$0xff]
    %v131 = vld [vmem:[#allocation5 + $0x148] sm:$0xff]
    %v132 = vld [vmem:[#allocation5 + $0x150] sm:$0xff]
    %v133 = vld [vmem:[#allocation5 + $0x158] sm:$0xff]
    %v134 = vld [vmem:[#allocation5 + $0x160] sm:$0xff]
    %v135 = vld [vmem:[#allocation5 + $0x168] sm:$0xff]
    %v136 = vld [vmem:[#allocation5 + $0x170] sm:$0xff]
    %v137 = vld [vmem:[#allocation5 + $0x178] sm:$0xff]
    %v138 = vld [vmem:[#allocation5 + $0x180] sm:$0xff]
    %v139 = vld [vmem:[#allocation5 + $0x188] sm:$0xff]
    %v140 = vld [vmem:[#allocation5 + $0x190] sm:$0xff]
    %v141 = vld [vmem:[#allocation5 + $0x198] sm:$0xff]
    %v142 = vld [vmem:[#allocation5 + $0x1a0] sm:$0xff]
    %v143 = vld [vmem:[#allocation5 + $0x1a8] sm:$0xff]
    %v144 = vld [vmem:[#allocation5 + $0x1b0] sm:$0xff]
    %v145 = vld [vmem:[#allocation5 + $0x1b8] sm:$0xff]
    %v146 = vld [vmem:[#allocation5 + $0x1c0] sm:$0xff]
    %v147 = vld [vmem:[#allocation5 + $0x1c8] sm:$0xff]
    %v148 = vld [vmem:[#allocation5 + $0x1d0] sm:$0xff]
    %v149 = vld [vmem:[#allocation5 + $0x1d8] sm:$0xff]
    %v150 = vld [vmem:[#allocation5 + $0x1e0] sm:$0xff]
    %v151 = vld [vmem:[#allocation5 + $0x1e8] sm:$0xff]
    %v152 = vld [vmem:[#allocation5 + $0x1f0] sm:$0xff]
    %v153 = vld [vmem:[#allocation5 + $0x1f8] sm:$0xff]
    %v154 = vld [vmem:[%s2] sm:$0x3]
    %v156 = vlaneseq
    %v157 = vshrl.u32 %v156, 7
    %v158 = vsub.s32 0, %v157
    %v159 = vrot.slane %v154, %v158
    %v160 = vlaneseq
    %v161 = vshrl.u32 %v160, 7
    %v162 = vsub.s32 1, %v161
    %v163 = vrot.slane %v154, %v162
    %166 = vmatprep.subr.mxu0 %v91
    %167 = vmatpush1.msra.mxu0 %v90
    %168 = vmatprep.subr.mxu0 %v93
    %169 = vmatpush1.msra.mxu0 %v92
    %170 = vmatprep.subr.mxu0 %v95
    %171 = vmatpush1.msra.mxu0 %v94
    %172 = vmatprep.subr.mxu0 %v97
    %173 = vmatpush1.msra.mxu0 %v96
    %174 = vmatprep.subr.mxu0 %v99
    %175 = vmatpush1.msra.mxu0 %v98
    %176 = vmatprep.subr.mxu0 %v101
    %177 = vmatpush1.msra.mxu0 %v100
    %178 = vmatprep.subr.mxu0 %v103
    %179 = vmatpush1.msra.mxu0 %v102
    %180 = vmatprep.subr.mxu0 %v105
    %181 = vmatpush1.msra.mxu0 %v104
    %182 = vmatprep.subr.mxu0 %v107
    %183 = vmatpush1.msra.mxu0 %v106
    %184 = vmatprep.subr.mxu0 %v109
    %185 = vmatpush1.msra.mxu0 %v108
    %186 = vmatprep.subr.mxu0 %v111
    %187 = vmatpush1.msra.mxu0 %v110
    %188 = vmatprep.subr.mxu0 %v113
    %189 = vmatpush1.msra.mxu0 %v112
    %190 = vmatprep.subr.mxu0 %v115
    %191 = vmatpush1.msra.mxu0 %v114
    %192 = vmatprep.subr.mxu0 %v117
    %193 = vmatpush1.msra.mxu0 %v116
    %194 = vmatprep.subr.mxu0 %v119
    %195 = vmatpush1.msra.mxu0 %v118
    %196 = vmatprep.subr.mxu0 %v121
    %197 = vmatpush1.msra.mxu0 %v120
    %198 = vmatprep.subr.mxu0 %v123
    %199 = vmatpush1.msra.mxu0 %v122
    %200 = vmatprep.subr.mxu0 %v125
    %201 = vmatpush1.msra.mxu0 %v124
    %202 = vmatprep.subr.mxu0 %v127
    %203 = vmatpush1.msra.mxu0 %v126
    %204 = vmatprep.subr.mxu0 %v129
    %205 = vmatpush1.msra.mxu0 %v128
    %206 = vmatprep.subr.mxu0 %v131
    %207 = vmatpush1.msra.mxu0 %v130
    %208 = vmatprep.subr.mxu0 %v133
    %209 = vmatpush1.msra.mxu0 %v132
    %210 = vmatprep.subr.mxu0 %v135
    %211 = vmatpush1.msra.mxu0 %v134
    %212 = vmatprep.subr.mxu0 %v137
    %213 = vmatpush1.msra.mxu0 %v136
    %214 = vmatprep.subr.mxu0 %v139
    %215 = vmatpush1.msra.mxu0 %v138
    %216 = vmatprep.subr.mxu0 %v141
    %217 = vmatpush1.msra.mxu0 %v140
    %218 = vmatprep.subr.mxu0 %v143
    %219 = vmatpush1.msra.mxu0 %v142
    %220 = vmatprep.subr.mxu0 %v145
    %221 = vmatpush1.msra.mxu0 %v144
    %222 = vmatprep.subr.mxu0 %v147
    %223 = vmatpush1.msra.mxu0 %v146
    %224 = vmatprep.subr.mxu0 %v149
    %225 = vmatpush1.msra.mxu0 %v148
    %226 = vmatprep.subr.mxu0 %v151
    %227 = vmatpush1.msra.mxu0 %v150
    %228 = vmatprep.subr.mxu0 %v153
    %229 = vmatpush1.msra.mxu0 %v152
    %230 = vmatprep.mubr.f32.mxu0 %v87
    %231 = vmatmul.mubr.f32.gmra.mrb[0].mxu0 %v86
    %v232 = vpop.f32.mrb[0].mxu0
    %v233 = vadd.f32 %v159, %v232
    %v234 = vpop.f32.mrb[0].mxu0
    %v235 = vadd.f32 %v163, %v234
    %236 = vmatprep.mubr.f32.mxu0 %v89
    %237 = vmatmul.mubr.f32.gmra.mrb[0].mxu0 %v88
    %v238 = vpop.f32.mrb[0].mxu0
    %v239 = vadd.f32 %v159, %v238
    %v240 = vpop.f32.mrb[0].mxu0
    %v241 = vadd.f32 %v163, %v240
    %242 = vdwg.mxu0
    %v243 = vmul.f32 %v233, 0.5
    %v244 = vmul.f32 %v235, 0.5
    %v245 = vmul.f32 %v239, 0.5
    %v246 = vmul.f32 %v241, 0.5
    %v247 = vmul.f32 %v233, 0.70710677
    %v248 = vmul.f32 %v235, 0.70710677
    %v249 = vmul.f32 %v239, 0.70710677
    %v250 = vmul.f32 %v241, 0.70710677
    %v251 = verf.f32.pop %v247
    %v252 = verf.f32.pop %v248
    %v253 = verf.f32.pop %v249
    %v254 = verf.f32.pop %v250
    %v255 = vadd.f32 %v251, 1.0
    %v256 = vadd.f32 %v252, 1.0
    %v257 = vadd.f32 %v253, 1.0
    %v258 = vadd.f32 %v254, 1.0
    %v259 = vmul.f32 %v243, %v255
    %v260 = vmul.f32 %v244, %v256
    %v261 = vmul.f32 %v245, %v257
    %v262 = vmul.f32 %v246, %v258
    %v263 = vld [vmem:[#allocation7] sm:$0xff]
    %v264 = vld [vmem:[#allocation7 + $0x8] sm:$0xff]
    %v265 = vld [vmem:[#allocation7 + $0x10] sm:$0xff]
    %v266 = vld [vmem:[#allocation7 + $0x18] sm:$0xff]
    %v267 = vld [vmem:[#allocation7 + $0x20] sm:$0xff]
    %v268 = vld [vmem:[#allocation7 + $0x28] sm:$0xff]
    %v269 = vld [vmem:[#allocation7 + $0x30] sm:$0xff]
    %v270 = vld [vmem:[#allocation7 + $0x38] sm:$0xff]
    %v271 = vld [vmem:[#allocation7 + $0x40] sm:$0xff]
    %v272 = vld [vmem:[#allocation7 + $0x48] sm:$0xff]
    %v273 = vld [vmem:[#allocation7 + $0x50] sm:$0xff]
    %v274 = vld [vmem:[#allocation7 + $0x58] sm:$0xff]
    %v275 = vld [vmem:[#allocation7 + $0x60] sm:$0xff]
    %v276 = vld [vmem:[#allocation7 + $0x68] sm:$0xff]
    %v277 = vld [vmem:[#allocation7 + $0x70] sm:$0xff]
    %v278 = vld [vmem:[#allocation7 + $0x78] sm:$0xff]
    %v279 = vld [vmem:[#allocation7 + $0x80] sm:$0xff]
    %v280 = vld [vmem:[#allocation7 + $0x88] sm:$0xff]
    %v281 = vld [vmem:[#allocation7 + $0x90] sm:$0xff]
    %v282 = vld [vmem:[#allocation7 + $0x98] sm:$0xff]
    %v283 = vld [vmem:[#allocation7 + $0xa0] sm:$0xff]
    %v284 = vld [vmem:[#allocation7 + $0xa8] sm:$0xff]
    %v285 = vld [vmem:[#allocation7 + $0xb0] sm:$0xff]
    %v286 = vld [vmem:[#allocation7 + $0xb8] sm:$0xff]
    %v287 = vld [vmem:[#allocation7 + $0xc0] sm:$0xff]
    %v288 = vld [vmem:[#allocation7 + $0xc8] sm:$0xff]
    %v289 = vld [vmem:[#allocation7 + $0xd0] sm:$0xff]
    %v290 = vld [vmem:[#allocation7 + $0xd8] sm:$0xff]
    %v291 = vld [vmem:[#allocation7 + $0xe0] sm:$0xff]
    %v292 = vld [vmem:[#allocation7 + $0xe8] sm:$0xff]
    %v293 = vld [vmem:[#allocation7 + $0xf0] sm:$0xff]
    %v294 = vld [vmem:[#allocation7 + $0xf8] sm:$0xff]
    %v295 = vld [vmem:[#allocation7 + $0x100] sm:$0xff]
    %v296 = vld [vmem:[#allocation7 + $0x108] sm:$0xff]
    %v297 = vld [vmem:[#allocation7 + $0x110] sm:$0xff]
    %v298 = vld [vmem:[#allocation7 + $0x118] sm:$0xff]
    %v299 = vld [vmem:[#allocation7 + $0x120] sm:$0xff]
    %v300 = vld [vmem:[#allocation7 + $0x128] sm:$0xff]
    %v301 = vld [vmem:[#allocation7 + $0x130] sm:$0xff]
    %v302 = vld [vmem:[#allocation7 + $0x138] sm:$0xff]
    %v303 = vld [vmem:[#allocation7 + $0x140] sm:$0xff]
    %v304 = vld [vmem:[#allocation7 + $0x148] sm:$0xff]
    %v305 = vld [vmem:[#allocation7 + $0x150] sm:$0xff]
    %v306 = vld [vmem:[#allocation7 + $0x158] sm:$0xff]
    %v307 = vld [vmem:[#allocation7 + $0x160] sm:$0xff]
    %v308 = vld [vmem:[#allocation7 + $0x168] sm:$0xff]
    %v309 = vld [vmem:[#allocation7 + $0x170] sm:$0xff]
    %v310 = vld [vmem:[#allocation7 + $0x178] sm:$0xff]
    %v311 = vld [vmem:[#allocation7 + $0x180] sm:$0xff]
    %v312 = vld [vmem:[#allocation7 + $0x188] sm:$0xff]
    %v313 = vld [vmem:[#allocation7 + $0x190] sm:$0xff]
    %v314 = vld [vmem:[#allocation7 + $0x198] sm:$0xff]
    %v315 = vld [vmem:[#allocation7 + $0x1a0] sm:$0xff]
    %v316 = vld [vmem:[#allocation7 + $0x1a8] sm:$0xff]
    %v317 = vld [vmem:[#allocation7 + $0x1b0] sm:$0xff]
    %v318 = vld [vmem:[#allocation7 + $0x1b8] sm:$0xff]
    %v319 = vld [vmem:[#allocation7 + $0x1c0] sm:$0xff]
    %v320 = vld [vmem:[#allocation7 + $0x1c8] sm:$0xff]
    %v321 = vld [vmem:[#allocation7 + $0x1d0] sm:$0xff]
    %v322 = vld [vmem:[#allocation7 + $0x1d8] sm:$0xff]
    %v323 = vld [vmem:[#allocation7 + $0x1e0] sm:$0xff]
    %v324 = vld [vmem:[#allocation7 + $0x1e8] sm:$0xff]
    %v325 = vld [vmem:[#allocation7 + $0x1f0] sm:$0xff]
    %v326 = vld [vmem:[#allocation7 + $0x1f8] sm:$0xff]
    %327 = vmatprep.subr.mxu0 %v264
    %328 = vmatpush1.msra.mxu0 %v263
    %329 = vmatprep.subr.mxu0 %v266
    %330 = vmatpush1.msra.mxu0 %v265
    %331 = vmatprep.subr.mxu0 %v268
    %332 = vmatpush1.msra.mxu0 %v267
    %333 = vmatprep.subr.mxu0 %v270
    %334 = vmatpush1.msra.mxu0 %v269
    %335 = vmatprep.subr.mxu0 %v272
    %336 = vmatpush1.msra.mxu0 %v271
    %337 = vmatprep.subr.mxu0 %v274
    %338 = vmatpush1.msra.mxu0 %v273
    %339 = vmatprep.subr.mxu0 %v276
    %340 = vmatpush1.msra.mxu0 %v275
    %341 = vmatprep.subr.mxu0 %v278
    %342 = vmatpush1.msra.mxu0 %v277
    %343 = vmatprep.subr.mxu0 %v280
    %344 = vmatpush1.msra.mxu0 %v279
    %345 = vmatprep.subr.mxu0 %v282
    %346 = vmatpush1.msra.mxu0 %v281
    %347 = vmatprep.subr.mxu0 %v284
    %348 = vmatpush1.msra.mxu0 %v283
    %349 = vmatprep.subr.mxu0 %v286
    %350 = vmatpush1.msra.mxu0 %v285
    %351 = vmatprep.subr.mxu0 %v288
    %352 = vmatpush1.msra.mxu0 %v287
    %353 = vmatprep.subr.mxu0 %v290
    %354 = vmatpush1.msra.mxu0 %v289
    %355 = vmatprep.subr.mxu0 %v292
    %356 = vmatpush1.msra.mxu0 %v291
    %357 = vmatprep.subr.mxu0 %v294
    %358 = vmatpush1.msra.mxu0 %v293
    %359 = vmatprep.subr.mxu0 %v296
    %360 = vmatpush1.msra.mxu0 %v295
    %361 = vmatprep.subr.mxu0 %v298
    %362 = vmatpush1.msra.mxu0 %v297
    %363 = vmatprep.subr.mxu0 %v300
    %364 = vmatpush1.msra.mxu0 %v299
    %365 = vmatprep.subr.mxu0 %v302
    %366 = vmatpush1.msra.mxu0 %v301
    %367 = vmatprep.subr.mxu0 %v304
    %368 = vmatpush1.msra.mxu0 %v303
    %369 = vmatprep.subr.mxu0 %v306
    %370 = vmatpush1.msra.mxu0 %v305
    %371 = vmatprep.subr.mxu0 %v308
    %372 = vmatpush1.msra.mxu0 %v307
    %373 = vmatprep.subr.mxu0 %v310
    %374 = vmatpush1.msra.mxu0 %v309
    %375 = vmatprep.subr.mxu0 %v312
    %376 = vmatpush1.msra.mxu0 %v311
    %377 = vmatprep.subr.mxu0 %v314
    %378 = vmatpush1.msra.mxu0 %v313
    %379 = vmatprep.subr.mxu0 %v316
    %380 = vmatpush1.msra.mxu0 %v315
    %381 = vmatprep.subr.mxu0 %v318
    %382 = vmatpush1.msra.mxu0 %v317
    %383 = vmatprep.subr.mxu0 %v320
    %384 = vmatpush1.msra.mxu0 %v319
    %385 = vmatprep.subr.mxu0 %v322
    %386 = vmatpush1.msra.mxu0 %v321
    %387 = vmatprep.subr.mxu0 %v324
    %388 = vmatpush1.msra.mxu0 %v323
    %389 = vmatprep.subr.mxu0 %v326
    %390 = vmatpush1.msra.mxu0 %v325
    %391 = vmatprep.mubr.f32.mxu0 %v260
    %392 = vmatmul.mubr.f32.gmra.mrb[0].mxu0 %v259
    %v393 = vpop.f32.mrb[0].mxu0
    %v394 = vadd.f32 0.0, %v393
    %v395 = vpop.f32.mrb[0].mxu0
    %v396 = vadd.f32 0.0, %v395
    %397 = vmatprep.mubr.f32.mxu0 %v262
    %398 = vmatmul.mubr.f32.gmra.mrb[0].mxu0 %v261
    %v399 = vpop.f32.mrb[0].mxu0
    %v400 = vadd.f32 0.0, %v399
    %v401 = vpop.f32.mrb[0].mxu0
    %v402 = vadd.f32 0.0, %v401
    %403 = vdwg.mxu0
    %v404 = vadd.f32 %v82, %v394
    %v405 = vadd.f32 %v83, %v396
    %v406 = vadd.f32 %v84, %v400
    %v407 = vadd.f32 %v85, %v402
    %408 = vst [vmem:[#allocation8] sm:$0xff] %v404
    %409 = vst [vmem:[#allocation8 + $0x8] sm:$0xff] %v405
    %410 = vst [vmem:[#allocation8 + $0x10] sm:$0xff] %v406
    %411 = vst [vmem:[#allocation8 + $0x18] sm:$0xff] %v407
    // Predicated region
    $region38: #{tpu_custom_call.1} parent=1 // pred_check
      _
    $region39: #{tpu_custom_call.1} parent=1 // pred_check_branch
      %413 = sbr.rel (0) target = $region41
    $region40: #{tpu_custom_call.1} parent=1 // pred_region
      %s415 = ssub.s32 512, 512
      %416 = vsyncadd [#allocation4], %s415
      %s417 = sshll.u32 [#allocation8], 4
      %s418 = int_to_ptr.vmem [resolvable:$true] %s417
      %423 = dma.vmem_to_hbm [thread:$0]  %s418, 512, %s5, [#allocation4], 256, 256, 16
    $region41: #{tpu_custom_call.1} parent=1 // pred_fallthru
      _
    // Predicated region
    $region42: #{tpu_custom_call.1} parent=1 // pred_check
      _
    $region43: #{tpu_custom_call.1} parent=1 // pred_check_branch
      %425 = sbr.rel (0) target = $region45
    $region44: #{tpu_custom_call.1} parent=1 // pred_region
      %426 = dma.done [#allocation4], 512
    $region45: #{tpu_custom_call.1} parent=1 // pred_fallthru
      _
    %427 = vsyncpa [#allocation3], 1
    %428 = vsyncpa [#allocation6], 1
    %429 = vsyncpa [#allocation4], 1

// kernel: tpu_custom_call.1
$region0: #{tpu_custom_call.1}
  #allocation0 [shape = 'u32[]', space=smem, size = 0x4, offset = 0x4, fixed_abs, tag = 'smem constant byte address 0x4 - core index']
  #allocation1 [shape = 'u32[144,128]{1,0:T(1,128)}', space=vmem, size = 0x12000, scoped, tag = 'internal scratch']
  %s0 = inlined_call_operand.hbm [shape: f32[16,256], index: 0, kind: input, shape index: {}]
  %s1 = inlined_call_operand.hbm [shape: f32[256,256], index: 1, kind: input, shape index: {}]
  %s2 = inlined_call_operand.vmem [shape: f32[1,256], index: 2, kind: input, shape index: {}]
  %s3 = inlined_call_operand.hbm [shape: f32[256,256], index: 3, kind: input, shape index: {}]
  %s4 = inlined_call_operand.vmem [shape: f32[1,256], index: 4, kind: input, shape index: {}]
  %s5 = inlined_call_operand.hbm [shape: f32[16,256], index: 5, kind: output, shape index: {}]
  %s6 = sld [smem:[#allocation0]]
  $region46: #{tpu_custom_call.1} parent=0
    _
  %s8 = ssub.s32 1, %s6
  %s9 = scalar_select 0, %s8, %s6
  $region1: #{tpu_custom_call.1} parent=0
    #allocation2 [shape = 'u8[16384]{0}', space=vmem, size = 0x4000, scoped, tag = 'input window, operand 0, single buffered']
    #allocation3 [shape = 's32[1]{0}', space=sflag, size = 0x4, scoped, tag = 'scoped memory for tpu_custom_call.1']
    #allocation4 [shape = 's32[1]{0}', space=sflag, size = 0x4, scoped, tag = 'scoped memory for tpu_custom_call.1']
    #allocation5 [shape = 'u8[262144]{0}', space=vmem, size = 0x40000, scoped, tag = 'input window, operand 1, single buffered']
    #allocation6 [shape = 's32[1]{0}', space=sflag, size = 0x4, scoped, tag = 'scoped memory for tpu_custom_call.1']
    #allocation7 [shape = 'u8[262144]{0}', space=vmem, size = 0x40000, scoped, tag = 'input window, operand 3, single buffered']
    #allocation8 [shape = 'u8[16384]{0}', space=vmem, size = 0x4000, scoped, tag = 'output window, operand 0, single buffered']
    %10 = vsyncpa [#allocation3], 0
    %11 = vsyncpa [#allocation6], 0
    %12 = vsyncpa [#allocation4], 0
    // Predicated region
    $region2: #{tpu_custom_call.1} parent=1 // pred_check
      _
    $region3: #{tpu_custom_call.1} parent=1 // pred_check_branch
      %14 = sbr.rel (0) target = $region5
    $region4: #{tpu_custom_call.1} parent=1 // pred_region
      %s16 = ssub.s32 512, 512
      %17 = vsyncadd [#allocation3], %s16
      %s18 = sshll.u32 [#allocation2], 4
      %s19 = int_to_ptr.vmem [resolvable:$true] %s18
      %24 = dma.hbm_to_vmem [thread:$0]  %s0, 512, %s19, [#allocation3], 256, 256, 16
    $region5: #{tpu_custom_call.1} parent=1 // pred_fallthru
      _
    // Predicated region
    $region6: #{tpu_custom_call.1} parent=1 // pred_check
      _
    $region7: #{tpu_custom_call.1} parent=1 // pred_check_branch
      %26 = sbr.rel (0) target = $region9
    $region8: #{tpu_custom_call.1} parent=1 // pred_region
      %s28 = ssub.s32 8192, 8192
      %29 = vsyncadd [#allocation6], %s28
      %s30 = sshll.u32 [#allocation5], 4
      %s31 = int_to_ptr.vmem [resolvable:$true] %s30
      %36 = dma.hbm_to_vmem [thread:$0]  %s1, 8192, %s31, [#allocation6], 256, 256, 16
    $region9: #{tpu_custom_call.1} parent=1 // pred_fallthru
      _
    // Predicated region
    $region10: #{tpu_custom_call.1} parent=1 // pred_check
      _
    $region11: #{tpu_custom_call.1} parent=1 // pred_check_branch
      %38 = sbr.rel (0) target = $region13
    $region12: #{tpu_custom_call.1} parent=1 // pred_region
      _
    $region13: #{tpu_custom_call.1} parent=1 // pred_fallthru
      _
    // Predicated region
    $region14: #{tpu_custom_call.1} parent=1 // pred_check
      _
    $region15: #{tpu_custom_call.1} parent=1 // pred_check_branch
      %40 = sbr.rel (0) target = $region17
    $region16: #{tpu_custom_call.1} parent=1 // pred_region
      %s42 = ssub.s32 8192, 8192
      %43 = vsyncadd [#allocation6], %s42
      %s44 = sshll.u32 [#allocation7], 4
      %s45 = int_to_ptr.vmem [resolvable:$true] %s44
      %50 = dma.hbm_to_vmem [thread:$0]  %s3, 8192, %s45, [#allocation6], 256, 256, 16
    $region17: #{tpu_custom_call.1} parent=1 // pred_fallthru
      _
    // Predicated region
    $region18: #{tpu_custom_call.1} parent=1 // pred_check
      _
    $region19: #{tpu_custom_call.1} parent=1 // pred_check_branch
      %52 = sbr.rel (0) target = $region21
    $region20: #{tpu_custom_call.1} parent=1 // pred_region
      _
    $region21: #{tpu_custom_call.1} parent=1 // pred_fallthru
      _
    // Predicated region
    $region22: #{tpu_custom_call.1} parent=1 // pred_check
      _
    $region23: #{tpu_custom_call.1} parent=1 // pred_check_branch
      %54 = sbr.rel (0) target = $region25
    $region24: #{tpu_custom_call.1} parent=1 // pred_region
      %55 = dma.done [#allocation3], 512
    $region25: #{tpu_custom_call.1} parent=1 // pred_fallthru
      _
    // Predicated region
    $region26: #{tpu_custom_call.1} parent=1 // pred_check
      _
    $region27: #{tpu_custom_call.1} parent=1 // pred_check_branch
      %57 = sbr.rel (0) target = $region29
    $region28: #{tpu_custom_call.1} parent=1 // pred_region
      %58 = dma.done [#allocation6], 8192
    $region29: #{tpu_custom_call.1} parent=1 // pred_fallthru
      _
    // Predicated region
    $region30: #{tpu_custom_call.1} parent=1 // pred_check
      _
    $region31: #{tpu_custom_call.1} parent=1 // pred_check_branch
      %60 = sbr.rel (0) target = $region33
    $region32: #{tpu_custom_call.1} parent=1 // pred_region
      %61 = dma.done [#allocation6], 8192
    $region33: #{tpu_custom_call.1} parent=1 // pred_fallthru
      _
    %p62 = scmp.eq.s32.totalorder 0, 0
    // Predicated region
    $region34: #{tpu_custom_call.1} parent=1 // pred_check
      %p63 = pneg %p62
    $region35: #{tpu_custom_call.1} parent=1 // pred_check_branch
      %65 = sbr.rel (%p63) target = $region37
    $region36: #{tpu_custom_call.1} parent=1 // pred_region
      %v66 = vld [vmem:[%s4] sm:$0x3]
      %v68 = vlaneseq
      %v69 = vshrl.u32 %v68, 7
      %v70 = vsub.s32 0, %v69
      %v71 = vrot.slane %v66, %v70
      %v72 = vlaneseq
      %v73 = vshrl.u32 %v72, 7
      %v74 = vsub.s32 1, %v73
      %v75 = vrot.slane %v66, %v74
      %78 = vst [vmem:[#allocation8] sm:$0xff] %v71
      %79 = vst [vmem:[#allocation8 + $0x8] sm:$0xff] %v75
      %80 = vst [vmem:[#allocation8 + $0x10] sm:$0xff] %v71
      %81 = vst [vmem:[#allocation8 + $0x18] sm:$0xff] %v75
    $region37: #{tpu_custom_call.1} parent=1 // pred_fallthru
      _
    %v82 = vld [vmem:[#allocation8] sm:$0xff]
    %v83 = vld [vmem:[#allocation8 + $0x8] sm:$0xff]
    %v84 = vld [vmem:[#allocation8 + $0x10] sm:$0xff]
    %v85 = vld [vmem:[#allocation8 + $0x18] sm:$0xff]
    %v86 = vld [vmem:[#allocation2] sm:$0xff]
    %v87 = vld [vmem:[#allocation2 + $0x8] sm:$0xff]
    %v88 = vld [vmem:[#allocation2 + $0x10] sm:$0xff]
    %v89 = vld [vmem:[#allocation2 + $0x18] sm:$0xff]
    %v90 = vld [vmem:[#allocation5] sm:$0xff]
    %v91 = vld [vmem:[#allocation5 + $0x8] sm:$0xff]
    %v92 = vld [vmem:[#allocation5 + $0x10] sm:$0xff]
    %v93 = vld [vmem:[#allocation5 + $0x18] sm:$0xff]
    %v94 = vld [vmem:[#allocation5 + $0x20] sm:$0xff]
    %v95 = vld [vmem:[#allocation5 + $0x28] sm:$0xff]
    %v96 = vld [vmem:[#allocation5 + $0x30] sm:$0xff]
    %v97 = vld [vmem:[#allocation5 + $0x38] sm:$0xff]
    %v98 = vld [vmem:[#allocation5 + $0x40] sm:$0xff]
    %v99 = vld [vmem:[#allocation5 + $0x48] sm:$0xff]
    %v100 = vld [vmem:[#allocation5 + $0x50] sm:$0xff]
    %v101 = vld [vmem:[#allocation5 + $0x58] sm:$0xff]
    %v102 = vld [vmem:[#allocation5 + $0x60] sm:$0xff]
    %v103 = vld [vmem:[#allocation5 + $0x68] sm:$0xff]
    %v104 = vld [vmem:[#allocation5 + $0x70] sm:$0xff]
    %v105 = vld [vmem:[#allocation5 + $0x78] sm:$0xff]
    %v106 = vld [vmem:[#allocation5 + $0x80] sm:$0xff]
    %v107 = vld [vmem:[#allocation5 + $0x88] sm:$0xff]
    %v108 = vld [vmem:[#allocation5 + $0x90] sm:$0xff]
    %v109 = vld [vmem:[#allocation5 + $0x98] sm:$0xff]
    %v110 = vld [vmem:[#allocation5 + $0xa0] sm:$0xff]
    %v111 = vld [vmem:[#allocation5 + $0xa8] sm:$0xff]
    %v112 = vld [vmem:[#allocation5 + $0xb0] sm:$0xff]
    %v113 = vld [vmem:[#allocation5 + $0xb8] sm:$0xff]
    %v114 = vld [vmem:[#allocation5 + $0xc0] sm:$0xff]
    %v115 = vld [vmem:[#allocation5 + $0xc8] sm:$0xff]
    %v116 = vld [vmem:[#allocation5 + $0xd0] sm:$0xff]
    %v117 = vld [vmem:[#allocation5 + $0xd8] sm:$0xff]
    %v118 = vld [vmem:[#allocation5 + $0xe0] sm:$0xff]
    %v119 = vld [vmem:[#allocation5 + $0xe8] sm:$0xff]
    %v120 = vld [vmem:[#allocation5 + $0xf0] sm:$0xff]
    %v121 = vld [vmem:[#allocation5 + $0xf8] sm:$0xff]
    %v122 = vld [vmem:[#allocation5 + $0x100] sm:$0xff]
    %v123 = vld [vmem:[#allocation5 + $0x108] sm:$0xff]
    %v124 = vld [vmem:[#allocation5 + $0x110] sm:$0xff]
    %v125 = vld [vmem:[#allocation5 + $0x118] sm:$0xff]
    %v126 = vld [vmem:[#allocation5 + $0x120] sm:$0xff]
    %v127 = vld [vmem:[#allocation5 + $0x128] sm:$0xff]
    %v128 = vld [vmem:[#allocation5 + $0x130] sm:$0xff]
    %v129 = vld [vmem:[#allocation5 + $0x138] sm:$0xff]
    %v130 = vld [vmem:[#allocation5 + $0x140] sm:$0xff]
    %v131 = vld [vmem:[#allocation5 + $0x148] sm:$0xff]
    %v132 = vld [vmem:[#allocation5 + $0x150] sm:$0xff]
    %v133 = vld [vmem:[#allocation5 + $0x158] sm:$0xff]
    %v134 = vld [vmem:[#allocation5 + $0x160] sm:$0xff]
    %v135 = vld [vmem:[#allocation5 + $0x168] sm:$0xff]
    %v136 = vld [vmem:[#allocation5 + $0x170] sm:$0xff]
    %v137 = vld [vmem:[#allocation5 + $0x178] sm:$0xff]
    %v138 = vld [vmem:[#allocation5 + $0x180] sm:$0xff]
    %v139 = vld [vmem:[#allocation5 + $0x188] sm:$0xff]
    %v140 = vld [vmem:[#allocation5 + $0x190] sm:$0xff]
    %v141 = vld [vmem:[#allocation5 + $0x198] sm:$0xff]
    %v142 = vld [vmem:[#allocation5 + $0x1a0] sm:$0xff]
    %v143 = vld [vmem:[#allocation5 + $0x1a8] sm:$0xff]
    %v144 = vld [vmem:[#allocation5 + $0x1b0] sm:$0xff]
    %v145 = vld [vmem:[#allocation5 + $0x1b8] sm:$0xff]
    %v146 = vld [vmem:[#allocation5 + $0x1c0] sm:$0xff]
    %v147 = vld [vmem:[#allocation5 + $0x1c8] sm:$0xff]
    %v148 = vld [vmem:[#allocation5 + $0x1d0] sm:$0xff]
    %v149 = vld [vmem:[#allocation5 + $0x1d8] sm:$0xff]
    %v150 = vld [vmem:[#allocation5 + $0x1e0] sm:$0xff]
    %v151 = vld [vmem:[#allocation5 + $0x1e8] sm:$0xff]
    %v152 = vld [vmem:[#allocation5 + $0x1f0] sm:$0xff]
    %v153 = vld [vmem:[#allocation5 + $0x1f8] sm:$0xff]
    %v154 = vld [vmem:[%s2] sm:$0x3]
    %v156 = vlaneseq
    %v157 = vshrl.u32 %v156, 7
    %v158 = vsub.s32 0, %v157
    %v159 = vrot.slane %v154, %v158
    %v160 = vlaneseq
    %v161 = vshrl.u32 %v160, 7
    %v162 = vsub.s32 1, %v161
    %v163 = vrot.slane %v154, %v162
    %166 = vmatprep.subr.mxu0 %v91
    %167 = vmatpush1.msra.mxu0 %v90
    %168 = vmatprep.subr.mxu0 %v93
    %169 = vmatpush1.msra.mxu0 %v92
    %170 = vmatprep.subr.mxu0 %v95
    %171 = vmatpush1.msra.mxu0 %v94
    %172 = vmatprep.subr.mxu0 %v97
    %173 = vmatpush1.msra.mxu0 %v96
    %174 = vmatprep.subr.mxu0 %v99
    %175 = vmatpush1.msra.mxu0 %v98
    %176 = vmatprep.subr.mxu0 %v101
    %177 = vmatpush1.msra.mxu0 %v100
    %178 = vmatprep.subr.mxu0 %v103
    %179 = vmatpush1.msra.mxu0 %v102
    %180 = vmatprep.subr.mxu0 %v105
    %181 = vmatpush1.msra.mxu0 %v104
    %182 = vmatprep.subr.mxu0 %v107
    %183 = vmatpush1.msra.mxu0 %v106
    %184 = vmatprep.subr.mxu0 %v109
    %185 = vmatpush1.msra.mxu0 %v108
    %186 = vmatprep.subr.mxu0 %v111
    %187 = vmatpush1.msra.mxu0 %v110
    %188 = vmatprep.subr.mxu0 %v113
    %189 = vmatpush1.msra.mxu0 %v112
    %190 = vmatprep.subr.mxu0 %v115
    %191 = vmatpush1.msra.mxu0 %v114
    %192 = vmatprep.subr.mxu0 %v117
    %193 = vmatpush1.msra.mxu0 %v116
    %194 = vmatprep.subr.mxu0 %v119
    %195 = vmatpush1.msra.mxu0 %v118
    %196 = vmatprep.subr.mxu0 %v121
    %197 = vmatpush1.msra.mxu0 %v120
    %198 = vmatprep.subr.mxu0 %v123
    %199 = vmatpush1.msra.mxu0 %v122
    %200 = vmatprep.subr.mxu0 %v125
    %201 = vmatpush1.msra.mxu0 %v124
    %202 = vmatprep.subr.mxu0 %v127
    %203 = vmatpush1.msra.mxu0 %v126
    %204 = vmatprep.subr.mxu0 %v129
    %205 = vmatpush1.msra.mxu0 %v128
    %206 = vmatprep.subr.mxu0 %v131
    %207 = vmatpush1.msra.mxu0 %v130
    %208 = vmatprep.subr.mxu0 %v133
    %209 = vmatpush1.msra.mxu0 %v132
    %210 = vmatprep.subr.mxu0 %v135
    %211 = vmatpush1.msra.mxu0 %v134
    %212 = vmatprep.subr.mxu0 %v137
    %213 = vmatpush1.msra.mxu0 %v136
    %214 = vmatprep.subr.mxu0 %v139
    %215 = vmatpush1.msra.mxu0 %v138
    %216 = vmatprep.subr.mxu0 %v141
    %217 = vmatpush1.msra.mxu0 %v140
    %218 = vmatprep.subr.mxu0 %v143
    %219 = vmatpush1.msra.mxu0 %v142
    %220 = vmatprep.subr.mxu0 %v145
    %221 = vmatpush1.msra.mxu0 %v144
    %222 = vmatprep.subr.mxu0 %v147
    %223 = vmatpush1.msra.mxu0 %v146
    %224 = vmatprep.subr.mxu0 %v149
    %225 = vmatpush1.msra.mxu0 %v148
    %226 = vmatprep.subr.mxu0 %v151
    %227 = vmatpush1.msra.mxu0 %v150
    %228 = vmatprep.subr.mxu0 %v153
    %229 = vmatpush1.msra.mxu0 %v152
    %230 = vmatprep.mubr.f32.mxu0 %v87
    %231 = vmatmul.mubr.f32.gmra.mrb[0].mxu0 %v86
    %v232 = vpop.f32.mrb[0].mxu0
    %v233 = vadd.f32 %v159, %v232
    %v234 = vpop.f32.mrb[0].mxu0
    %v235 = vadd.f32 %v163, %v234
    %236 = vmatprep.mubr.f32.mxu0 %v89
    %237 = vmatmul.mubr.f32.gmra.mrb[0].mxu0 %v88
    %v238 = vpop.f32.mrb[0].mxu0
    %v239 = vadd.f32 %v159, %v238
    %v240 = vpop.f32.mrb[0].mxu0
    %v241 = vadd.f32 %v163, %v240
    %242 = vdwg.mxu0
    %v243 = vmul.f32 %v233, 0.5
    %v244 = vmul.f32 %v235, 0.5
    %v245 = vmul.f32 %v239, 0.5
    %v246 = vmul.f32 %v241, 0.5
    %v247 = vmul.f32 %v233, 0.70710677
    %v248 = vmul.f32 %v235, 0.70710677
    %v249 = vmul.f32 %v239, 0.70710677
    %v250 = vmul.f32 %v241, 0.70710677
    %v251 = verf.f32.pop %v247
    %v252 = verf.f32.pop %v248
    %v253 = verf.f32.pop %v249
    %v254 = verf.f32.pop %v250
    %v255 = vadd.f32 %v251, 1.0
    %v256 = vadd.f32 %v252, 1.0
    %v257 = vadd.f32 %v253, 1.0
    %v258 = vadd.f32 %v254, 1.0
    %v259 = vmul.f32 %v243, %v255
    %v260 = vmul.f32 %v244, %v256
    %v261 = vmul.f32 %v245, %v257
    %v262 = vmul.f32 %v246, %v258
    %v263 = vld [vmem:[#allocation7] sm:$0xff]
    %v264 = vld [vmem:[#allocation7 + $0x8] sm:$0xff]
    %v265 = vld [vmem:[#allocation7 + $0x10] sm:$0xff]
    %v266 = vld [vmem:[#allocation7 + $0x18] sm:$0xff]
    %v267 = vld [vmem:[#allocation7 + $0x20] sm:$0xff]
    %v268 = vld [vmem:[#allocation7 + $0x28] sm:$0xff]
    %v269 = vld [vmem:[#allocation7 + $0x30] sm:$0xff]
    %v270 = vld [vmem:[#allocation7 + $0x38] sm:$0xff]
    %v271 = vld [vmem:[#allocation7 + $0x40] sm:$0xff]
    %v272 = vld [vmem:[#allocation7 + $0x48] sm:$0xff]
    %v273 = vld [vmem:[#allocation7 + $0x50] sm:$0xff]
    %v274 = vld [vmem:[#allocation7 + $0x58] sm:$0xff]
    %v275 = vld [vmem:[#allocation7 + $0x60] sm:$0xff]
    %v276 = vld [vmem:[#allocation7 + $0x68] sm:$0xff]
    %v277 = vld [vmem:[#allocation7 + $0x70] sm:$0xff]
    %v278 = vld [vmem:[#allocation7 + $0x78] sm:$0xff]
    %v279 = vld [vmem:[#allocation7 + $0x80] sm:$0xff]
    %v280 = vld [vmem:[#allocation7 + $0x88] sm:$0xff]
    %v281 = vld [vmem:[#allocation7 + $0x90] sm:$0xff]
    %v282 = vld [vmem:[#allocation7 + $0x98] sm:$0xff]
    %v283 = vld [vmem:[#allocation7 + $0xa0] sm:$0xff]
    %v284 = vld [vmem:[#allocation7 + $0xa8] sm:$0xff]
    %v285 = vld [vmem:[#allocation7 + $0xb0] sm:$0xff]
    %v286 = vld [vmem:[#allocation7 + $0xb8] sm:$0xff]
    %v287 = vld [vmem:[#allocation7 + $0xc0] sm:$0xff]
    %v288 = vld [vmem:[#allocation7 + $0xc8] sm:$0xff]
    %v289 = vld [vmem:[#allocation7 + $0xd0] sm:$0xff]
    %v290 = vld [vmem:[#allocation7 + $0xd8] sm:$0xff]
    %v291 = vld [vmem:[#allocation7 + $0xe0] sm:$0xff]
    %v292 = vld [vmem:[#allocation7 + $0xe8] sm:$0xff]
    %v293 = vld [vmem:[#allocation7 + $0xf0] sm:$0xff]
    %v294 = vld [vmem:[#allocation7 + $0xf8] sm:$0xff]
    %v295 = vld [vmem:[#allocation7 + $0x100] sm:$0xff]
    %v296 = vld [vmem:[#allocation7 + $0x108] sm:$0xff]
    %v297 = vld [vmem:[#allocation7 + $0x110] sm:$0xff]
    %v298 = vld [vmem:[#allocation7 + $0x118] sm:$0xff]
    %v299 = vld [vmem:[#allocation7 + $0x120] sm:$0xff]
    %v300 = vld [vmem:[#allocation7 + $0x128] sm:$0xff]
    %v301 = vld [vmem:[#allocation7 + $0x130] sm:$0xff]
    %v302 = vld [vmem:[#allocation7 + $0x138] sm:$0xff]
    %v303 = vld [vmem:[#allocation7 + $0x140] sm:$0xff]
    %v304 = vld [vmem:[#allocation7 + $0x148] sm:$0xff]
    %v305 = vld [vmem:[#allocation7 + $0x150] sm:$0xff]
    %v306 = vld [vmem:[#allocation7 + $0x158] sm:$0xff]
    %v307 = vld [vmem:[#allocation7 + $0x160] sm:$0xff]
    %v308 = vld [vmem:[#allocation7 + $0x168] sm:$0xff]
    %v309 = vld [vmem:[#allocation7 + $0x170] sm:$0xff]
    %v310 = vld [vmem:[#allocation7 + $0x178] sm:$0xff]
    %v311 = vld [vmem:[#allocation7 + $0x180] sm:$0xff]
    %v312 = vld [vmem:[#allocation7 + $0x188] sm:$0xff]
    %v313 = vld [vmem:[#allocation7 + $0x190] sm:$0xff]
    %v314 = vld [vmem:[#allocation7 + $0x198] sm:$0xff]
    %v315 = vld [vmem:[#allocation7 + $0x1a0] sm:$0xff]
    %v316 = vld [vmem:[#allocation7 + $0x1a8] sm:$0xff]
    %v317 = vld [vmem:[#allocation7 + $0x1b0] sm:$0xff]
    %v318 = vld [vmem:[#allocation7 + $0x1b8] sm:$0xff]
    %v319 = vld [vmem:[#allocation7 + $0x1c0] sm:$0xff]
    %v320 = vld [vmem:[#allocation7 + $0x1c8] sm:$0xff]
    %v321 = vld [vmem:[#allocation7 + $0x1d0] sm:$0xff]
    %v322 = vld [vmem:[#allocation7 + $0x1d8] sm:$0xff]
    %v323 = vld [vmem:[#allocation7 + $0x1e0] sm:$0xff]
    %v324 = vld [vmem:[#allocation7 + $0x1e8] sm:$0xff]
    %v325 = vld [vmem:[#allocation7 + $0x1f0] sm:$0xff]
    %v326 = vld [vmem:[#allocation7 + $0x1f8] sm:$0xff]
    %327 = vmatprep.subr.mxu0 %v264
    %328 = vmatpush1.msra.mxu0 %v263
    %329 = vmatprep.subr.mxu0 %v266
    %330 = vmatpush1.msra.mxu0 %v265
    %331 = vmatprep.subr.mxu0 %v268
    %332 = vmatpush1.msra.mxu0 %v267
    %333 = vmatprep.subr.mxu0 %v270
    %334 = vmatpush1.msra.mxu0 %v269
    %335 = vmatprep.subr.mxu0 %v272
    %336 = vmatpush1.msra.mxu0 %v271
    %337 = vmatprep.subr.mxu0 %v274
    %338 = vmatpush1.msra.mxu0 %v273
    %339 = vmatprep.subr.mxu0 %v276
    %340 = vmatpush1.msra.mxu0 %v275
    %341 = vmatprep.subr.mxu0 %v278
    %342 = vmatpush1.msra.mxu0 %v277
    %343 = vmatprep.subr.mxu0 %v280
    %344 = vmatpush1.msra.mxu0 %v279
    %345 = vmatprep.subr.mxu0 %v282
    %346 = vmatpush1.msra.mxu0 %v281
    %347 = vmatprep.subr.mxu0 %v284
    %348 = vmatpush1.msra.mxu0 %v283
    %349 = vmatprep.subr.mxu0 %v286
    %350 = vmatpush1.msra.mxu0 %v285
    %351 = vmatprep.subr.mxu0 %v288
    %352 = vmatpush1.msra.mxu0 %v287
    %353 = vmatprep.subr.mxu0 %v290
    %354 = vmatpush1.msra.mxu0 %v289
    %355 = vmatprep.subr.mxu0 %v292
    %356 = vmatpush1.msra.mxu0 %v291
    %357 = vmatprep.subr.mxu0 %v294
    %358 = vmatpush1.msra.mxu0 %v293
    %359 = vmatprep.subr.mxu0 %v296
    %360 = vmatpush1.msra.mxu0 %v295
    %361 = vmatprep.subr.mxu0 %v298
    %362 = vmatpush1.msra.mxu0 %v297
    %363 = vmatprep.subr.mxu0 %v300
    %364 = vmatpush1.msra.mxu0 %v299
    %365 = vmatprep.subr.mxu0 %v302
    %366 = vmatpush1.msra.mxu0 %v301
    %367 = vmatprep.subr.mxu0 %v304
    %368 = vmatpush1.msra.mxu0 %v303
    %369 = vmatprep.subr.mxu0 %v306
    %370 = vmatpush1.msra.mxu0 %v305
    %371 = vmatprep.subr.mxu0 %v308
    %372 = vmatpush1.msra.mxu0 %v307
    %373 = vmatprep.subr.mxu0 %v310
    %374 = vmatpush1.msra.mxu0 %v309
    %375 = vmatprep.subr.mxu0 %v312
    %376 = vmatpush1.msra.mxu0 %v311
    %377 = vmatprep.subr.mxu0 %v314
    %378 = vmatpush1.msra.mxu0 %v313
    %379 = vmatprep.subr.mxu0 %v316
    %380 = vmatpush1.msra.mxu0 %v315
    %381 = vmatprep.subr.mxu0 %v318
    %382 = vmatpush1.msra.mxu0 %v317
    %383 = vmatprep.subr.mxu0 %v320
    %384 = vmatpush1.msra.mxu0 %v319
    %385 = vmatprep.subr.mxu0 %v322
    %386 = vmatpush1.msra.mxu0 %v321
    %387 = vmatprep.subr.mxu0 %v324
    %388 = vmatpush1.msra.mxu0 %v323
    %389 = vmatprep.subr.mxu0 %v326
    %390 = vmatpush1.msra.mxu0 %v325
    %391 = vmatprep.mubr.f32.mxu0 %v260
    %392 = vmatmul.mubr.f32.gmra.mrb[0].mxu0 %v259
    %v393 = vpop.f32.mrb[0].mxu0
    %v394 = vadd.f32 0.0, %v393
    %v395 = vpop.f32.mrb[0].mxu0
    %v396 = vadd.f32 0.0, %v395
    %397 = vmatprep.mubr.f32.mxu0 %v262
    %398 = vmatmul.mubr.f32.gmra.mrb[0].mxu0 %v261
    %v399 = vpop.f32.mrb[0].mxu0
    %v400 = vadd.f32 0.0, %v399
    %v401 = vpop.f32.mrb[0].mxu0
    %v402 = vadd.f32 0.0, %v401
    %403 = vdwg.mxu0
    %v404 = vadd.f32 %v82, %v394
    %v405 = vadd.f32 %v83, %v396
    %v406 = vadd.f32 %v84, %v400
    %v407 = vadd.f32 %v85, %v402
    %408 = vst [vmem:[#allocation8] sm:$0xff] %v404
    %409 = vst [vmem:[#allocation8 + $0x8] sm:$0xff] %v405
    %410 = vst [vmem:[#allocation8 + $0x10] sm:$0xff] %v406
    %411 = vst [vmem:[#allocation8 + $0x18] sm:$0xff] %v407
    // Predicated region
    $region38: #{tpu_custom_call.1} parent=1 // pred_check
      _
    $region39: #{tpu_custom_call.1} parent=1 // pred_check_branch
      %413 = sbr.rel (0) target = $region41
    $region40: #{tpu_custom_call.1} parent=1 // pred_region
      %s415 = ssub.s32 512, 512
      %416 = vsyncadd [#allocation4], %s415
      %s417 = sshll.u32 [#allocation8], 4
      %s418 = int_to_ptr.vmem [resolvable:$true] %s417
      %423 = dma.vmem_to_hbm [thread:$0]  %s418, 512, %s5, [#allocation4], 256, 256, 16
    $region41: #{tpu_custom_call.1} parent=1 // pred_fallthru
      _
    // Predicated region
    $region42: #{tpu_custom_call.1} parent=1 // pred_check
      _
    $region43: #{tpu_custom_call.1} parent=1 // pred_check_branch
      %425 = sbr.rel (0) target = $region45
    $region44: #{tpu_custom_call.1} parent=1 // pred_region
      %426 = dma.done [#allocation4], 512
    $region45: #{tpu_custom_call.1} parent=1 // pred_fallthru
      _
    %427 = vsyncpa [#allocation3], 1
    %428 = vsyncpa [#allocation6], 1
    %429 = vsyncpa [#allocation4], 1

</llo_original>
